<compile_context>
chip_gen: v6e
topology: v6e:2x2x1
jax: 0.10.0
libtpu: 0.0.40
codegen_flags: <defaults>
</compile_context>

<pallas_src>
import jax
import jax.numpy as jnp
from jax import lax
from jax.experimental import pallas as pl
from jax.experimental.pallas import tpu as pltpu

IN_FEATURES = 128
OUT_FEATURES = 1
TM = 1024  # rows per tile: 1024*128*4 B = 512 KiB/buffer, fits all VMEM defaults


def _linear_kernel(x_ref, w_ref, b_ref, o_ref):
    # x_ref: (TM, 128) VMEM, w_ref: (1, 128) VMEM, b_ref: (1, 1) SMEM,
    # o_ref: (1, TM) VMEM (lane-dense output slab).
    acc = lax.dot_general(
        w_ref[...], x_ref[...],
        dimension_numbers=(((1,), (1,)), ((), ())),
        preferred_element_type=jnp.float32,
    )  # (1, TM)
    o_ref[...] = (acc + b_ref[0, 0]).astype(o_ref.dtype)


def netD_D_forward(x, weight, bias, *, tm=TM):
    """Pallas equivalent of _netD_D.forward.

    x: float array whose element count is a multiple of 128 (e.g. NCHW).
    weight: (1, 128) as in nn.Linear(128, 1).
    bias: (1,).
    Returns: (N, 1, 1, 1) with N = x.size // 128.
    """
    x2d = x.reshape(-1, IN_FEATURES)                      # same as torch .view(-1, 128)
    n = x2d.shape[0]

    w_row = weight.reshape(OUT_FEATURES, IN_FEATURES).astype(jnp.float32)  # (1, 128)
    b2d = bias.reshape(1, 1).astype(jnp.float32)                           # (1, 1) -> SMEM

    cost = pl.CostEstimate(
        flops=2 * n * IN_FEATURES,
        transcendentals=0,
        bytes_accessed=n * IN_FEATURES * 4 + n * 4 + IN_FEATURES * 4,
    )

    out = pl.pallas_call(
        _linear_kernel,
        out_shape=jax.ShapeDtypeStruct((1, n), jnp.float32),
        grid=(pl.cdiv(n, tm),),
        in_specs=[
            pl.BlockSpec((tm, IN_FEATURES), lambda i: (i, 0)),
            pl.BlockSpec((OUT_FEATURES, IN_FEATURES), lambda i: (0, 0)),
            pl.BlockSpec(memory_space=pltpu.MemorySpace.SMEM),
        ],
        out_specs=pl.BlockSpec((1, tm), lambda i: (0, i)),
        compiler_params=pltpu.CompilerParams(
            dimension_semantics=("parallel",)),
        cost_estimate=cost,
    )(x2d, w_row, b2d)

    return out.reshape(-1, 1, 1, 1)


def init_params(key):
    # nn.Linear(128, 1) default init: U(-1/sqrt(128), 1/sqrt(128)).
    kw, kb = jax.random.split(key)
    bound = 1.0 / jnp.sqrt(jnp.float32(IN_FEATURES))
    weight = jax.random.uniform(
        kw, (OUT_FEATURES, IN_FEATURES), jnp.float32, -bound, bound)
    bias = jax.random.uniform(
        kb, (OUT_FEATURES,), jnp.float32, -bound, bound)
    return weight, bias


if __name__ == "__main__":
    key = jax.random.PRNGKey(0)
    k_x, k_p = jax.random.split(key)

    # NCHW input whose C*H*W == 128 (what the discriminator consumes):
    # batch=2, channels=8, spatial=4x4 -> view(-1, 128) gives (2, 128).
    x = jax.random.normal(k_x, (2, 8, 4, 4), dtype=jnp.float32)
    weight, bias = init_params(k_p)

    y = netD_D_forward(x, weight, bias)
    y = jax.block_until_ready(y)

    # Reference check in plain JAX.
    y_ref = (x.reshape(-1, 128) @ weight.T + bias).reshape(-1, 1, 1, 1)
    assert y.shape == (2, 1, 1, 1), y.shape
    assert jnp.allclose(y, y_ref, atol=1e-5, rtol=1e-5)

    print("KERNEL_OK")
</pallas_src>

<mosaic_0001>
module attributes {stable_mosaic.version = 11 : i64} {
  func.func @_linear_kernel(%arg0: i32, %arg1: memref<1024x128xf32, #tpu.memory_space<vmem>>, %arg2: memref<1x128xf32, #tpu.memory_space<vmem>>, %arg3: memref<1x1xf32, #tpu.memory_space<smem>>, %arg4: memref<1x1024xf32, #tpu.memory_space<vmem>>) attributes {dimension_semantics = [#tpu.dimension_semantics<parallel>], iteration_bounds = array<i64: 1>, scalar_prefetch = 0 : i64, scratch_operands = 0 : i64, tpu.core_type = #tpu.core_type<tc>, window_params = [{transform_indices = @transform_0, window_bounds = array<i64: 1024, 128>}, {pipeline_mode = #tpu.pipeline_mode<synchronous>, transform_indices = @transform_1, window_bounds = array<i64: 1, 128>}, {transform_indices = @transform_2, window_bounds = array<i64: 1, 1>}, {transform_indices = @transform_3, window_bounds = array<i64: 1, 1024>}]} {
    %c0 = arith.constant 0 : index
    %c0_0 = arith.constant 0 : index
    %0 = vector.load %arg2[%c0, %c0_0] : memref<1x128xf32, #tpu.memory_space<vmem>>, vector<1x128xf32>
    %c0_1 = arith.constant 0 : index
    %c0_2 = arith.constant 0 : index
    %1 = vector.load %arg1[%c0_1, %c0_2] : memref<1024x128xf32, #tpu.memory_space<vmem>>, vector<1024x128xf32>
    %cst = arith.constant dense<0.000000e+00> : vector<1x1024xf32>
    %2 = tpu.matmul %0, %1, %cst {dimension_numbers = #tpu.dot_dimension_numbers<[1], [1], [0], [0], [0, 0, 1, 0], [], []>} : vector<1x128xf32>, vector<1024x128xf32>, vector<1x1024xf32> -> vector<1x1024xf32>
    %c0_3 = arith.constant 0 : index
    %c0_4 = arith.constant 0 : index
    %3 = memref.load %arg3[%c0_3, %c0_4] : memref<1x1xf32, #tpu.memory_space<smem>>
    %4 = vector.broadcast %3 : f32 to vector<1x1024xf32>
    %5 = arith.addf %2, %4 : vector<1x1024xf32>
    %c0_5 = arith.constant 0 : index
    %c0_6 = arith.constant 0 : index
    %6 = vector.load %arg4[%c0_5, %c0_6] : memref<1x1024xf32, #tpu.memory_space<vmem>>, vector<1x1024xf32>
    tpu.vector_store %arg4[%c0_5, %c0_6], %5 {strides = array<i32>} : memref<1x1024xf32, #tpu.memory_space<vmem>>, vector<1x1024xf32>,
    return
  }
  func.func @transform_0(%arg0: i32) -> (i32, i32) {
    %c0_i32 = arith.constant 0 : i32
    %c0_i32_0 = arith.constant 0 : i32
    return %arg0, %c0_i32 : i32, i32
  }
  func.func @transform_1(%arg0: i32) -> (i32, i32) {
    %c0_i32 = arith.constant 0 : i32
    %c0_i32_0 = arith.constant 0 : i32
    %c0_i32_1 = arith.constant 0 : i32
    return %c0_i32, %c0_i32_0 : i32, i32
  }
  func.func @transform_2(%arg0: i32) -> (i32, i32) {
    %c0_i32 = arith.constant 0 : i32
    %c0_i32_0 = arith.constant 0 : i32
    %c0_i32_1 = arith.constant 0 : i32
    return %c0_i32, %c0_i32_0 : i32, i32
  }
  func.func @transform_3(%arg0: i32) -> (i32, i32) {
    %c0_i32 = arith.constant 0 : i32
    %c0_i32_0 = arith.constant 0 : i32
    return %c0_i32, %arg0 : i32, i32
  }
}

</mosaic_0001>

<llo_original>
// kernel: tpu_custom_call.1
$region0: #{tpu_custom_call.1}
  #allocation0 [shape = 'u32[]', space=smem, size = 0x4, offset = 0x4, fixed_abs, tag = 'smem constant byte address 0x4 - core index']
  #allocation1 [shape = 'u32[144,128]{1,0:T(1,128)}', space=vmem, size = 0x12000, scoped, tag = 'internal scratch']
  #allocation2 [shape = 'f32[1,1]{1,0:T(1,128)S(6)}', space=smem, size = 0x200, scoped, tag = 'scoped memory for tpu_custom_call.1']
  %s0 = inlined_call_operand.vmem [shape: f32[2,128], index: 0, kind: input, shape index: {}]
  %s1 = inlined_call_operand.vmem [shape: f32[1,128], index: 1, kind: input, shape index: {}]
  %s2 = inlined_call_operand.<no memory space> [shape: f32[1,1], index: 2, kind: input, shape index: {}]
  %s3 = inlined_call_operand.hbm [shape: f32[1,2], index: 3, kind: output, shape index: {}]
  %s4 = sld [smem:[#allocation0]]
  $region22: #{tpu_custom_call.1} parent=0
    _
  %s6 = ssub.s32 1, %s4
  %s7 = scalar_select 0, %s6, %s4
  %8 = sst [smem:[#allocation2]] %s2
  $region1: #{tpu_custom_call.1} parent=0
    #allocation3 [shape = 'u8[4096]{0}', space=vmem, size = 0x1000, scoped, tag = 'output window, operand 0, single buffered']
    #allocation4 [shape = 's32[1]{0}', space=sflag, size = 0x4, scoped, tag = 'scoped memory for tpu_custom_call.1']
    %9 = vsyncpa [#allocation4], 0
    // Predicated region
    $region2: #{tpu_custom_call.1} parent=1 // pred_check
      _
    $region3: #{tpu_custom_call.1} parent=1 // pred_check_branch
      %11 = sbr.rel (0) target = $region5
    $region4: #{tpu_custom_call.1} parent=1 // pred_region
      _
    $region5: #{tpu_custom_call.1} parent=1 // pred_fallthru
      _
    // Predicated region
    $region6: #{tpu_custom_call.1} parent=1 // pred_check
      _
    $region7: #{tpu_custom_call.1} parent=1 // pred_check_branch
      %13 = sbr.rel (0) target = $region9
    $region8: #{tpu_custom_call.1} parent=1 // pred_region
      _
    $region9: #{tpu_custom_call.1} parent=1 // pred_fallthru
      _
    // Predicated region
    $region10: #{tpu_custom_call.1} parent=1 // pred_check
      _
    $region11: #{tpu_custom_call.1} parent=1 // pred_check_branch
      %15 = sbr.rel (0) target = $region13
    $region12: #{tpu_custom_call.1} parent=1 // pred_region
      _
    $region13: #{tpu_custom_call.1} parent=1 // pred_fallthru
      _
    %v16 = vld [vmem:[%s1] sm:$0x1]
    %v17 = vld [vmem:[%s0] sm:$0xff]
    %v18 = vld [vmem:[%s0 + $0x8] sm:$0xff]
    %v19 = vld [vmem:[%s0 + $0x10] sm:$0xff]
    %v20 = vld [vmem:[%s0 + $0x18] sm:$0xff]
    %v21 = vld [vmem:[%s0 + $0x20] sm:$0xff]
    %v22 = vld [vmem:[%s0 + $0x28] sm:$0xff]
    %v23 = vld [vmem:[%s0 + $0x30] sm:$0xff]
    %v24 = vld [vmem:[%s0 + $0x38] sm:$0xff]
    %v25 = vld [vmem:[%s0 + $0x40] sm:$0xff]
    %v26 = vld [vmem:[%s0 + $0x48] sm:$0xff]
    %v27 = vld [vmem:[%s0 + $0x50] sm:$0xff]
    %v28 = vld [vmem:[%s0 + $0x58] sm:$0xff]
    %v29 = vld [vmem:[%s0 + $0x60] sm:$0xff]
    %v30 = vld [vmem:[%s0 + $0x68] sm:$0xff]
    %v31 = vld [vmem:[%s0 + $0x70] sm:$0xff]
    %v32 = vld [vmem:[%s0 + $0x78] sm:$0xff]
    %v33 = vld [vmem:[%s0 + $0x80] sm:$0xff]
    %v34 = vld [vmem:[%s0 + $0x88] sm:$0xff]
    %v35 = vld [vmem:[%s0 + $0x90] sm:$0xff]
    %v36 = vld [vmem:[%s0 + $0x98] sm:$0xff]
    %v37 = vld [vmem:[%s0 + $0xa0] sm:$0xff]
    %v38 = vld [vmem:[%s0 + $0xa8] sm:$0xff]
    %v39 = vld [vmem:[%s0 + $0xb0] sm:$0xff]
    %v40 = vld [vmem:[%s0 + $0xb8] sm:$0xff]
    %v41 = vld [vmem:[%s0 + $0xc0] sm:$0xff]
    %v42 = vld [vmem:[%s0 + $0xc8] sm:$0xff]
    %v43 = vld [vmem:[%s0 + $0xd0] sm:$0xff]
    %v44 = vld [vmem:[%s0 + $0xd8] sm:$0xff]
    %v45 = vld [vmem:[%s0 + $0xe0] sm:$0xff]
    %v46 = vld [vmem:[%s0 + $0xe8] sm:$0xff]
    %v47 = vld [vmem:[%s0 + $0xf0] sm:$0xff]
    %v48 = vld [vmem:[%s0 + $0xf8] sm:$0xff]
    %v49 = vld [vmem:[%s0 + $0x100] sm:$0xff]
    %v50 = vld [vmem:[%s0 + $0x108] sm:$0xff]
    %v51 = vld [vmem:[%s0 + $0x110] sm:$0xff]
    %v52 = vld [vmem:[%s0 + $0x118] sm:$0xff]
    %v53 = vld [vmem:[%s0 + $0x120] sm:$0xff]
    %v54 = vld [vmem:[%s0 + $0x128] sm:$0xff]
    %v55 = vld [vmem:[%s0 + $0x130] sm:$0xff]
    %v56 = vld [vmem:[%s0 + $0x138] sm:$0xff]
    %v57 = vld [vmem:[%s0 + $0x140] sm:$0xff]
    %v58 = vld [vmem:[%s0 + $0x148] sm:$0xff]
    %v59 = vld [vmem:[%s0 + $0x150] sm:$0xff]
    %v60 = vld [vmem:[%s0 + $0x158] sm:$0xff]
    %v61 = vld [vmem:[%s0 + $0x160] sm:$0xff]
    %v62 = vld [vmem:[%s0 + $0x168] sm:$0xff]
    %v63 = vld [vmem:[%s0 + $0x170] sm:$0xff]
    %v64 = vld [vmem:[%s0 + $0x178] sm:$0xff]
    %v65 = vld [vmem:[%s0 + $0x180] sm:$0xff]
    %v66 = vld [vmem:[%s0 + $0x188] sm:$0xff]
    %v67 = vld [vmem:[%s0 + $0x190] sm:$0xff]
    %v68 = vld [vmem:[%s0 + $0x198] sm:$0xff]
    %v69 = vld [vmem:[%s0 + $0x1a0] sm:$0xff]
    %v70 = vld [vmem:[%s0 + $0x1a8] sm:$0xff]
    %v71 = vld [vmem:[%s0 + $0x1b0] sm:$0xff]
    %v72 = vld [vmem:[%s0 + $0x1b8] sm:$0xff]
    %v73 = vld [vmem:[%s0 + $0x1c0] sm:$0xff]
    %v74 = vld [vmem:[%s0 + $0x1c8] sm:$0xff]
    %v75 = vld [vmem:[%s0 + $0x1d0] sm:$0xff]
    %v76 = vld [vmem:[%s0 + $0x1d8] sm:$0xff]
    %v77 = vld [vmem:[%s0 + $0x1e0] sm:$0xff]
    %v78 = vld [vmem:[%s0 + $0x1e8] sm:$0xff]
    %v79 = vld [vmem:[%s0 + $0x1f0] sm:$0xff]
    %v80 = vld [vmem:[%s0 + $0x1f8] sm:$0xff]
    %v81 = vld [vmem:[%s0 + $0x200] sm:$0xff]
    %v82 = vld [vmem:[%s0 + $0x208] sm:$0xff]
    %v83 = vld [vmem:[%s0 + $0x210] sm:$0xff]
    %v84 = vld [vmem:[%s0 + $0x218] sm:$0xff]
    %v85 = vld [vmem:[%s0 + $0x220] sm:$0xff]
    %v86 = vld [vmem:[%s0 + $0x228] sm:$0xff]
    %v87 = vld [vmem:[%s0 + $0x230] sm:$0xff]
    %v88 = vld [vmem:[%s0 + $0x238] sm:$0xff]
    %v89 = vld [vmem:[%s0 + $0x240] sm:$0xff]
    %v90 = vld [vmem:[%s0 + $0x248] sm:$0xff]
    %v91 = vld [vmem:[%s0 + $0x250] sm:$0xff]
    %v92 = vld [vmem:[%s0 + $0x258] sm:$0xff]
    %v93 = vld [vmem:[%s0 + $0x260] sm:$0xff]
    %v94 = vld [vmem:[%s0 + $0x268] sm:$0xff]
    %v95 = vld [vmem:[%s0 + $0x270] sm:$0xff]
    %v96 = vld [vmem:[%s0 + $0x278] sm:$0xff]
    %v97 = vld [vmem:[%s0 + $0x280] sm:$0xff]
    %v98 = vld [vmem:[%s0 + $0x288] sm:$0xff]
    %v99 = vld [vmem:[%s0 + $0x290] sm:$0xff]
    %v100 = vld [vmem:[%s0 + $0x298] sm:$0xff]
    %v101 = vld [vmem:[%s0 + $0x2a0] sm:$0xff]
    %v102 = vld [vmem:[%s0 + $0x2a8] sm:$0xff]
    %v103 = vld [vmem:[%s0 + $0x2b0] sm:$0xff]
    %v104 = vld [vmem:[%s0 + $0x2b8] sm:$0xff]
    %v105 = vld [vmem:[%s0 + $0x2c0] sm:$0xff]
    %v106 = vld [vmem:[%s0 + $0x2c8] sm:$0xff]
    %v107 = vld [vmem:[%s0 + $0x2d0] sm:$0xff]
    %v108 = vld [vmem:[%s0 + $0x2d8] sm:$0xff]
    %v109 = vld [vmem:[%s0 + $0x2e0] sm:$0xff]
    %v110 = vld [vmem:[%s0 + $0x2e8] sm:$0xff]
    %v111 = vld [vmem:[%s0 + $0x2f0] sm:$0xff]
    %v112 = vld [vmem:[%s0 + $0x2f8] sm:$0xff]
    %v113 = vld [vmem:[%s0 + $0x300] sm:$0xff]
    %v114 = vld [vmem:[%s0 + $0x308] sm:$0xff]
    %v115 = vld [vmem:[%s0 + $0x310] sm:$0xff]
    %v116 = vld [vmem:[%s0 + $0x318] sm:$0xff]
    %v117 = vld [vmem:[%s0 + $0x320] sm:$0xff]
    %v118 = vld [vmem:[%s0 + $0x328] sm:$0xff]
    %v119 = vld [vmem:[%s0 + $0x330] sm:$0xff]
    %v120 = vld [vmem:[%s0 + $0x338] sm:$0xff]
    %v121 = vld [vmem:[%s0 + $0x340] sm:$0xff]
    %v122 = vld [vmem:[%s0 + $0x348] sm:$0xff]
    %v123 = vld [vmem:[%s0 + $0x350] sm:$0xff]
    %v124 = vld [vmem:[%s0 + $0x358] sm:$0xff]
    %v125 = vld [vmem:[%s0 + $0x360] sm:$0xff]
    %v126 = vld [vmem:[%s0 + $0x368] sm:$0xff]
    %v127 = vld [vmem:[%s0 + $0x370] sm:$0xff]
    %v128 = vld [vmem:[%s0 + $0x378] sm:$0xff]
    %v129 = vld [vmem:[%s0 + $0x380] sm:$0xff]
    %v130 = vld [vmem:[%s0 + $0x388] sm:$0xff]
    %v131 = vld [vmem:[%s0 + $0x390] sm:$0xff]
    %v132 = vld [vmem:[%s0 + $0x398] sm:$0xff]
    %v133 = vld [vmem:[%s0 + $0x3a0] sm:$0xff]
    %v134 = vld [vmem:[%s0 + $0x3a8] sm:$0xff]
    %v135 = vld [vmem:[%s0 + $0x3b0] sm:$0xff]
    %v136 = vld [vmem:[%s0 + $0x3b8] sm:$0xff]
    %v137 = vld [vmem:[%s0 + $0x3c0] sm:$0xff]
    %v138 = vld [vmem:[%s0 + $0x3c8] sm:$0xff]
    %v139 = vld [vmem:[%s0 + $0x3d0] sm:$0xff]
    %v140 = vld [vmem:[%s0 + $0x3d8] sm:$0xff]
    %v141 = vld [vmem:[%s0 + $0x3e0] sm:$0xff]
    %v142 = vld [vmem:[%s0 + $0x3e8] sm:$0xff]
    %v143 = vld [vmem:[%s0 + $0x3f0] sm:$0xff]
    %v144 = vld [vmem:[%s0 + $0x3f8] sm:$0xff]
    %s145 = sld [smem:[#allocation2]]
    %v146 = vstv %s145
    %147 = vmatprep.subr.mxu0 0.0
    %148 = vmatpush1.xpose.msra.mxu0 %v32
    %149 = vmatprep.subr.mxu0 0.0
    %150 = vmatpush1.xpose.msra.mxu0 %v31
    %151 = vmatprep.subr.mxu0 0.0
    %152 = vmatpush1.xpose.msra.mxu0 %v30
    %153 = vmatprep.subr.mxu0 0.0
    %154 = vmatpush1.xpose.msra.mxu0 %v29
    %155 = vmatprep.subr.mxu0 0.0
    %156 = vmatpush1.xpose.msra.mxu0 %v28
    %157 = vmatprep.subr.mxu0 0.0
    %158 = vmatpush1.xpose.msra.mxu0 %v27
    %159 = vmatprep.subr.mxu0 0.0
    %160 = vmatpush1.xpose.msra.mxu0 %v26
    %161 = vmatprep.subr.mxu0 0.0
    %162 = vmatpush1.xpose.msra.mxu0 %v25
    %163 = vmatprep.subr.mxu0 0.0
    %164 = vmatpush1.xpose.msra.mxu0 %v24
    %165 = vmatprep.subr.mxu0 0.0
    %166 = vmatpush1.xpose.msra.mxu0 %v23
    %167 = vmatprep.subr.mxu0 0.0
    %168 = vmatpush1.xpose.msra.mxu0 %v22
    %169 = vmatprep.subr.mxu0 0.0
    %170 = vmatpush1.xpose.msra.mxu0 %v21
    %171 = vmatprep.subr.mxu0 0.0
    %172 = vmatpush1.xpose.msra.mxu0 %v20
    %173 = vmatprep.subr.mxu0 0.0
    %174 = vmatpush1.xpose.msra.mxu0 %v19
    %175 = vmatprep.subr.mxu0 0.0
    %176 = vmatpush1.xpose.msra.mxu0 %v18
    %177 = vmatprep.subr.mxu0 0.0
    %178 = vmatpush1.xpose.msra.mxu0 %v17
    %179 = vmatprep.subr.mxu0 0.0
    %180 = vmatpush2.xpose.msra.mxu0 %v48
    %181 = vmatprep.subr.mxu0 0.0
    %182 = vmatpush2.xpose.msra.mxu0 %v47
    %183 = vmatprep.subr.mxu0 0.0
    %184 = vmatpush2.xpose.msra.mxu0 %v46
    %185 = vmatprep.subr.mxu0 0.0
    %186 = vmatpush2.xpose.msra.mxu0 %v45
    %187 = vmatprep.subr.mxu0 0.0
    %188 = vmatpush2.xpose.msra.mxu0 %v44
    %189 = vmatprep.subr.mxu0 0.0
    %190 = vmatpush2.xpose.msra.mxu0 %v43
    %191 = vmatprep.subr.mxu0 0.0
    %192 = vmatpush2.xpose.msra.mxu0 %v42
    %193 = vmatprep.subr.mxu0 0.0
    %194 = vmatpush2.xpose.msra.mxu0 %v41
    %195 = vmatprep.subr.mxu0 0.0
    %196 = vmatpush2.xpose.msra.mxu0 %v40
    %197 = vmatprep.subr.mxu0 0.0
    %198 = vmatpush2.xpose.msra.mxu0 %v39
    %199 = vmatprep.subr.mxu0 0.0
    %200 = vmatpush2.xpose.msra.mxu0 %v38
    %201 = vmatprep.subr.mxu0 0.0
    %202 = vmatpush2.xpose.msra.mxu0 %v37
    %203 = vmatprep.subr.mxu0 0.0
    %204 = vmatpush2.xpose.msra.mxu0 %v36
    %205 = vmatprep.subr.mxu0 0.0
    %206 = vmatpush2.xpose.msra.mxu0 %v35
    %207 = vmatprep.subr.mxu0 0.0
    %208 = vmatpush2.xpose.msra.mxu0 %v34
    %209 = vmatprep.subr.mxu0 0.0
    %210 = vmatpush2.xpose.msra.mxu0 %v33
    %211 = vmatprep.mubr.f32.mxu0 0.0
    %212 = vmatmul.mubr.f32.gmra.mxu0 %v16
    %v213 = vpop.f32.mrf.mxu0
    %v214 = vadd.f32 %v146, %v213
    %v215 = vpop.f32.mrf.mxu0
    %v216 = vadd.f32 %v146, %v215
    %217 = vdwg.mxu0
    %218 = vmatprep.subr.mxu0 0.0
    %219 = vmatpush1.xpose.msra.mxu0 %v64
    %220 = vmatprep.subr.mxu0 0.0
    %221 = vmatpush1.xpose.msra.mxu0 %v63
    %222 = vmatprep.subr.mxu0 0.0
    %223 = vmatpush1.xpose.msra.mxu0 %v62
    %224 = vmatprep.subr.mxu0 0.0
    %225 = vmatpush1.xpose.msra.mxu0 %v61
    %226 = vmatprep.subr.mxu0 0.0
    %227 = vmatpush1.xpose.msra.mxu0 %v60
    %228 = vmatprep.subr.mxu0 0.0
    %229 = vmatpush1.xpose.msra.mxu0 %v59
    %230 = vmatprep.subr.mxu0 0.0
    %231 = vmatpush1.xpose.msra.mxu0 %v58
    %232 = vmatprep.subr.mxu0 0.0
    %233 = vmatpush1.xpose.msra.mxu0 %v57
    %234 = vmatprep.subr.mxu0 0.0
    %235 = vmatpush1.xpose.msra.mxu0 %v56
    %236 = vmatprep.subr.mxu0 0.0
    %237 = vmatpush1.xpose.msra.mxu0 %v55
    %238 = vmatprep.subr.mxu0 0.0
    %239 = vmatpush1.xpose.msra.mxu0 %v54
    %240 = vmatprep.subr.mxu0 0.0
    %241 = vmatpush1.xpose.msra.mxu0 %v53
    %242 = vmatprep.subr.mxu0 0.0
    %243 = vmatpush1.xpose.msra.mxu0 %v52
    %244 = vmatprep.subr.mxu0 0.0
    %245 = vmatpush1.xpose.msra.mxu0 %v51
    %246 = vmatprep.subr.mxu0 0.0
    %247 = vmatpush1.xpose.msra.mxu0 %v50
    %248 = vmatprep.subr.mxu0 0.0
    %249 = vmatpush1.xpose.msra.mxu0 %v49
    %250 = vmatprep.subr.mxu0 0.0
    %251 = vmatpush2.xpose.msra.mxu0 %v80
    %252 = vmatprep.subr.mxu0 0.0
    %253 = vmatpush2.xpose.msra.mxu0 %v79
    %254 = vmatprep.subr.mxu0 0.0
    %255 = vmatpush2.xpose.msra.mxu0 %v78
    %256 = vmatprep.subr.mxu0 0.0
    %257 = vmatpush2.xpose.msra.mxu0 %v77
    %258 = vmatprep.subr.mxu0 0.0
    %259 = vmatpush2.xpose.msra.mxu0 %v76
    %260 = vmatprep.subr.mxu0 0.0
    %261 = vmatpush2.xpose.msra.mxu0 %v75
    %262 = vmatprep.subr.mxu0 0.0
    %263 = vmatpush2.xpose.msra.mxu0 %v74
    %264 = vmatprep.subr.mxu0 0.0
    %265 = vmatpush2.xpose.msra.mxu0 %v73
    %266 = vmatprep.subr.mxu0 0.0
    %267 = vmatpush2.xpose.msra.mxu0 %v72
    %268 = vmatprep.subr.mxu0 0.0
    %269 = vmatpush2.xpose.msra.mxu0 %v71
    %270 = vmatprep.subr.mxu0 0.0
    %271 = vmatpush2.xpose.msra.mxu0 %v70
    %272 = vmatprep.subr.mxu0 0.0
    %273 = vmatpush2.xpose.msra.mxu0 %v69
    %274 = vmatprep.subr.mxu0 0.0
    %275 = vmatpush2.xpose.msra.mxu0 %v68
    %276 = vmatprep.subr.mxu0 0.0
    %277 = vmatpush2.xpose.msra.mxu0 %v67
    %278 = vmatprep.subr.mxu0 0.0
    %279 = vmatpush2.xpose.msra.mxu0 %v66
    %280 = vmatprep.subr.mxu0 0.0
    %281 = vmatpush2.xpose.msra.mxu0 %v65
    %282 = vmatprep.mubr.f32.mxu0 0.0
    %283 = vmatmul.mubr.f32.gmra.mxu0 %v16
    %v284 = vpop.f32.mrf.mxu0
    %v285 = vadd.f32 %v146, %v284
    %v286 = vpop.f32.mrf.mxu0
    %v287 = vadd.f32 %v146, %v286
    %288 = vdwg.mxu0
    %289 = vmatprep.subr.mxu0 0.0
    %290 = vmatpush1.xpose.msra.mxu0 %v96
    %291 = vmatprep.subr.mxu0 0.0
    %292 = vmatpush1.xpose.msra.mxu0 %v95
    %293 = vmatprep.subr.mxu0 0.0
    %294 = vmatpush1.xpose.msra.mxu0 %v94
    %295 = vmatprep.subr.mxu0 0.0
    %296 = vmatpush1.xpose.msra.mxu0 %v93
    %297 = vmatprep.subr.mxu0 0.0
    %298 = vmatpush1.xpose.msra.mxu0 %v92
    %299 = vmatprep.subr.mxu0 0.0
    %300 = vmatpush1.xpose.msra.mxu0 %v91
    %301 = vmatprep.subr.mxu0 0.0
    %302 = vmatpush1.xpose.msra.mxu0 %v90
    %303 = vmatprep.subr.mxu0 0.0
    %304 = vmatpush1.xpose.msra.mxu0 %v89
    %305 = vmatprep.subr.mxu0 0.0
    %306 = vmatpush1.xpose.msra.mxu0 %v88
    %307 = vmatprep.subr.mxu0 0.0
    %308 = vmatpush1.xpose.msra.mxu0 %v87
    %309 = vmatprep.subr.mxu0 0.0
    %310 = vmatpush1.xpose.msra.mxu0 %v86
    %311 = vmatprep.subr.mxu0 0.0
    %312 = vmatpush1.xpose.msra.mxu0 %v85
    %313 = vmatprep.subr.mxu0 0.0
    %314 = vmatpush1.xpose.msra.mxu0 %v84
    %315 = vmatprep.subr.mxu0 0.0
    %316 = vmatpush1.xpose.msra.mxu0 %v83
    %317 = vmatprep.subr.mxu0 0.0
    %318 = vmatpush1.xpose.msra.mxu0 %v82
    %319 = vmatprep.subr.mxu0 0.0
    %320 = vmatpush1.xpose.msra.mxu0 %v81
    %321 = vmatprep.subr.mxu0 0.0
    %322 = vmatpush2.xpose.msra.mxu0 %v112
    %323 = vmatprep.subr.mxu0 0.0
    %324 = vmatpush2.xpose.msra.mxu0 %v111
    %325 = vmatprep.subr.mxu0 0.0
    %326 = vmatpush2.xpose.msra.mxu0 %v110
    %327 = vmatprep.subr.mxu0 0.0
    %328 = vmatpush2.xpose.msra.mxu0 %v109
    %329 = vmatprep.subr.mxu0 0.0
    %330 = vmatpush2.xpose.msra.mxu0 %v108
    %331 = vmatprep.subr.mxu0 0.0
    %332 = vmatpush2.xpose.msra.mxu0 %v107
    %333 = vmatprep.subr.mxu0 0.0
    %334 = vmatpush2.xpose.msra.mxu0 %v106
    %335 = vmatprep.subr.mxu0 0.0
    %336 = vmatpush2.xpose.msra.mxu0 %v105
    %337 = vmatprep.subr.mxu0 0.0
    %338 = vmatpush2.xpose.msra.mxu0 %v104
    %339 = vmatprep.subr.mxu0 0.0
    %340 = vmatpush2.xpose.msra.mxu0 %v103
    %341 = vmatprep.subr.mxu0 0.0
    %342 = vmatpush2.xpose.msra.mxu0 %v102
    %343 = vmatprep.subr.mxu0 0.0
    %344 = vmatpush2.xpose.msra.mxu0 %v101
    %345 = vmatprep.subr.mxu0 0.0
    %346 = vmatpush2.xpose.msra.mxu0 %v100
    %347 = vmatprep.subr.mxu0 0.0
    %348 = vmatpush2.xpose.msra.mxu0 %v99
    %349 = vmatprep.subr.mxu0 0.0
    %350 = vmatpush2.xpose.msra.mxu0 %v98
    %351 = vmatprep.subr.mxu0 0.0
    %352 = vmatpush2.xpose.msra.mxu0 %v97
    %353 = vmatprep.mubr.f32.mxu0 0.0
    %354 = vmatmul.mubr.f32.gmra.mxu0 %v16
    %v355 = vpop.f32.mrf.mxu0
    %v356 = vadd.f32 %v146, %v355
    %v357 = vpop.f32.mrf.mxu0
    %v358 = vadd.f32 %v146, %v357
    %359 = vdwg.mxu0
    %360 = vmatprep.subr.mxu0 0.0
    %361 = vmatpush1.xpose.msra.mxu0 %v128
    %362 = vmatprep.subr.mxu0 0.0
    %363 = vmatpush1.xpose.msra.mxu0 %v127
    %364 = vmatprep.subr.mxu0 0.0
    %365 = vmatpush1.xpose.msra.mxu0 %v126
    %366 = vmatprep.subr.mxu0 0.0
    %367 = vmatpush1.xpose.msra.mxu0 %v125
    %368 = vmatprep.subr.mxu0 0.0
    %369 = vmatpush1.xpose.msra.mxu0 %v124
    %370 = vmatprep.subr.mxu0 0.0
    %371 = vmatpush1.xpose.msra.mxu0 %v123
    %372 = vmatprep.subr.mxu0 0.0
    %373 = vmatpush1.xpose.msra.mxu0 %v122
    %374 = vmatprep.subr.mxu0 0.0
    %375 = vmatpush1.xpose.msra.mxu0 %v121
    %376 = vmatprep.subr.mxu0 0.0
    %377 = vmatpush1.xpose.msra.mxu0 %v120
    %378 = vmatprep.subr.mxu0 0.0
    %379 = vmatpush1.xpose.msra.mxu0 %v119
    %380 = vmatprep.subr.mxu0 0.0
    %381 = vmatpush1.xpose.msra.mxu0 %v118
    %382 = vmatprep.subr.mxu0 0.0
    %383 = vmatpush1.xpose.msra.mxu0 %v117
    %384 = vmatprep.subr.mxu0 0.0
    %385 = vmatpush1.xpose.msra.mxu0 %v116
    %386 = vmatprep.subr.mxu0 0.0
    %387 = vmatpush1.xpose.msra.mxu0 %v115
    %388 = vmatprep.subr.mxu0 0.0
    %389 = vmatpush1.xpose.msra.mxu0 %v114
    %390 = vmatprep.subr.mxu0 0.0
    %391 = vmatpush1.xpose.msra.mxu0 %v113
    %392 = vmatprep.subr.mxu0 0.0
    %393 = vmatpush2.xpose.msra.mxu0 %v144
    %394 = vmatprep.subr.mxu0 0.0
    %395 = vmatpush2.xpose.msra.mxu0 %v143
    %396 = vmatprep.subr.mxu0 0.0
    %397 = vmatpush2.xpose.msra.mxu0 %v142
    %398 = vmatprep.subr.mxu0 0.0
    %399 = vmatpush2.xpose.msra.mxu0 %v141
    %400 = vmatprep.subr.mxu0 0.0
    %401 = vmatpush2.xpose.msra.mxu0 %v140
    %402 = vmatprep.subr.mxu0 0.0
    %403 = vmatpush2.xpose.msra.mxu0 %v139
    %404 = vmatprep.subr.mxu0 0.0
    %405 = vmatpush2.xpose.msra.mxu0 %v138
    %406 = vmatprep.subr.mxu0 0.0
    %407 = vmatpush2.xpose.msra.mxu0 %v137
    %408 = vmatprep.subr.mxu0 0.0
    %409 = vmatpush2.xpose.msra.mxu0 %v136
    %410 = vmatprep.subr.mxu0 0.0
    %411 = vmatpush2.xpose.msra.mxu0 %v135
    %412 = vmatprep.subr.mxu0 0.0
    %413 = vmatpush2.xpose.msra.mxu0 %v134
    %414 = vmatprep.subr.mxu0 0.0
    %415 = vmatpush2.xpose.msra.mxu0 %v133
    %416 = vmatprep.subr.mxu0 0.0
    %417 = vmatpush2.xpose.msra.mxu0 %v132
    %418 = vmatprep.subr.mxu0 0.0
    %419 = vmatpush2.xpose.msra.mxu0 %v131
    %420 = vmatprep.subr.mxu0 0.0
    %421 = vmatpush2.xpose.msra.mxu0 %v130
    %422 = vmatprep.subr.mxu0 0.0
    %423 = vmatpush2.xpose.msra.mxu0 %v129
    %424 = vmatprep.mubr.f32.mxu0 0.0
    %425 = vmatmul.mubr.f32.gmra.mxu0 %v16
    %v426 = vpop.f32.mrf.mxu0
    %v427 = vadd.f32 %v146, %v426
    %v428 = vpop.f32.mrf.mxu0
    %v429 = vadd.f32 %v146, %v428
    %430 = vdwg.mxu0
    %v439 = vcombine.low %v214, %v216
    %v440 = vcombine.low %v285, %v287
    %v441 = vcombine.low %v356, %v358
    %v442 = vcombine.low %v427, %v429
    %v444 = vunpack.c.l.s4 1966171168
    %v445 = vunpack.c.0.s8 %v444
    %v446 = vlaneseq
    %v447 = vshrl.u32 %v446, 7
    %v448 = vsub.s32 %v445, %v447
    %v449 = vrot.slane %v439, %v448
    %v451 = vunpack.c.l.s4 1966171168
    %v452 = vunpack.c.0.s8 %v451
    %v453 = vlaneseq
    %v454 = vshrl.u32 %v453, 7
    %v455 = vsub.s32 %v452, %v454
    %v456 = vrot.slane %v440, %v455
    %v458 = vunpack.c.l.s4 1966171168
    %v459 = vunpack.c.0.s8 %v458
    %v460 = vlaneseq
    %v461 = vshrl.u32 %v460, 7
    %v462 = vsub.s32 %v459, %v461
    %v463 = vrot.slane %v441, %v462
    %v465 = vunpack.c.l.s4 1966171168
    %v466 = vunpack.c.0.s8 %v465
    %v467 = vlaneseq
    %v468 = vshrl.u32 %v467, 7
    %v469 = vsub.s32 %v466, %v468
    %v470 = vrot.slane %v442, %v469
    %v471 = vcombine.low %v449, %v456
    %v472 = vcombine.low %v463, %v470
    %v474 = vunpack.c.l.s4 1966171168
    %v475 = vunpack.c.0.s8 %v474
    %v476 = vlaneseq
    %v477 = vshrl.u32 %v476, 7
    %v478 = vsub.s32 %v475, %v477
    %v479 = vrot.slane %v471, %v478
    %v481 = vunpack.c.l.s4 1966171168
    %v482 = vunpack.c.0.s8 %v481
    %v483 = vlaneseq
    %v484 = vshrl.u32 %v483, 7
    %v485 = vsub.s32 %v482, %v484
    %v486 = vrot.slane %v472, %v485
    %v487 = vcombine.low %v479, %v486
    %489 = vst [vmem:[#allocation3] sm:$0xff] %v487
    // Predicated region
    $region14: #{tpu_custom_call.1} parent=1 // pred_check
      _
    $region15: #{tpu_custom_call.1} parent=1 // pred_check_branch
      %491 = sbr.rel (0) target = $region17
    $region16: #{tpu_custom_call.1} parent=1 // pred_region
      %s493 = ssub.s32 128, 16
      %494 = vsyncadd [#allocation4], %s493
      %s496 = sshll.u32 [#allocation3], 4
      %s497 = int_to_ptr.vmem [resolvable:$true] %s496
      %499 = dma.vmem_to_hbm [thread:$0]  %s497, 16, %s3, [#allocation4]
    $region17: #{tpu_custom_call.1} parent=1 // pred_fallthru
      _
    // Predicated region
    $region18: #{tpu_custom_call.1} parent=1 // pred_check
      _
    $region19: #{tpu_custom_call.1} parent=1 // pred_check_branch
      %501 = sbr.rel (0) target = $region21
    $region20: #{tpu_custom_call.1} parent=1 // pred_region
      %502 = dma.done [#allocation4], 128
    $region21: #{tpu_custom_call.1} parent=1 // pred_fallthru
      _
    %503 = vsyncpa [#allocation4], 1

</llo_original>
